<compile_context>
chip_gen: v6e
topology: v6e:2x2x1
jax: 0.10.0
libtpu: 0.0.40
codegen_flags: <defaults>
</compile_context>

<pallas_src>
import functools

import jax
import jax.numpy as jnp
from jax.experimental import pallas as pl
from jax.experimental.pallas import tpu as pltpu


_TARGET_BLOCK_BYTES = 8 * 1024 * 1024   # ~8 MiB of input per grid step (dtype-aware)
_ROW_TILE_CAP = 128                     # rows per block (sublane-packed, multiple of 8)


def _pick_row_tile(n_rows):
    """Largest multiple-of-8 divisor of n_rows (<= cap), preferring >= 2 parallel blocks."""
    if n_rows % 8 != 0:
        return n_rows                    # full extent: always a legal block shape
    divisors = [d for d in range(8, min(n_rows, _ROW_TILE_CAP) + 1, 8) if n_rows % d == 0]
    if not divisors:
        return n_rows
    multi = [d for d in divisors if n_rows // d >= 2]  # keep both v7x TCs busy when possible
    return max(multi) if multi else max(divisors)


def _pick_s_tile(S, tR, itemsize):
    """Lane-axis tile: full extent if it fits the byte budget, else a multiple of 128."""
    cap_elems = _TARGET_BLOCK_BYTES // max(tR * itemsize, 1)
    cap = max(128, (cap_elems // 128) * 128)
    if S <= cap:
        return S                         # full extent: always legal, no tail mask needed
    return cap                           # multiple of 128; non-dividing tail masked in-kernel


def _pool_kernel(x_ref, o_ref, acc_ref, *, inv_s, s_total, s_tile, masked_tail):
    # x_ref: (tR, tS) input tile; o_ref: (tR, 1) pooled output; acc_ref: (tR, 1) f32 scratch.
    k = pl.program_id(1)                 # reduction (S) axis, innermost / "arbitrary"
    last = pl.num_programs(1) - 1

    @pl.when(k == 0)
    def _():
        acc_ref[...] = jnp.zeros_like(acc_ref)

    x = x_ref[...].astype(jnp.float32)   # (tR, tS)

    if masked_tail:
        # Only the final S-block can run past the array end; pay for the mask only there.
        @pl.when(k == last)
        def _():
            lane = jax.lax.broadcasted_iota(jnp.int32, x.shape, 1)
            xm = jnp.where(k * s_tile + lane < s_total, x, 0.0)
            acc_ref[...] += jnp.sum(xm, axis=-1, keepdims=True)

        @pl.when(k != last)
        def _():
            acc_ref[...] += jnp.sum(x, axis=-1, keepdims=True)
    else:
        acc_ref[...] += jnp.sum(x, axis=-1, keepdims=True)

    @pl.when(k == last)
    def _():
        # Scale by the true 1/S and cast back to the input dtype.
        o_ref[...] = (acc_ref[...] * inv_s).astype(o_ref.dtype)


def adaptive_global_pooling(x, *, row_tile=None, s_tile=None):
    """AdaptiveAvgPool3d((1, 1, 1)) forward: (N, C, D, H, W) -> (N, C, 1, 1, 1)."""
    N, C, D, H, W = x.shape
    S = D * H * W
    R = N * C
    itemsize = jnp.dtype(x.dtype).itemsize
    x_rows = x.reshape(R, S)             # free: contiguous trailing dims, no HBM transpose

    tR = _pick_row_tile(R) if row_tile is None else row_tile
    assert R % tR == 0 and (tR % 8 == 0 or tR == R), (R, tR)
    tS = _pick_s_tile(S, tR, itemsize) if s_tile is None else s_tile
    assert tS == S or tS % 128 == 0, (S, tS)

    n_r = R // tR
    n_s = pl.cdiv(S, tS)
    masked_tail = (n_s * tS != S)

    kernel = functools.partial(
        _pool_kernel,
        inv_s=1.0 / float(S),
        s_total=S,
        s_tile=tS,
        masked_tail=masked_tail,
    )

    # Derive the VMEM budget from the actual footprint (2 pipeline buffers + acc + out + slack).
    block_bytes = tR * tS * itemsize
    needed = 2 * block_bytes + tR * 128 * 4 + 2 * tR * 128 * itemsize + (4 << 20)
    vmem_limit = int(min(48 << 20, max(8 << 20, needed)))

    pooled = pl.pallas_call(
        kernel,
        out_shape=jax.ShapeDtypeStruct((R, 1), x.dtype),
        grid=(n_r, n_s),
        in_specs=[pl.BlockSpec((tR, tS), lambda r, k: (r, k))],
        out_specs=pl.BlockSpec((tR, 1), lambda r, k: (r, 0)),
        scratch_shapes=[pltpu.VMEM((tR, 1), jnp.float32)],
        compiler_params=pltpu.CompilerParams(
            dimension_semantics=("parallel", "arbitrary"),
            vmem_limit_bytes=vmem_limit,
        ),
    )(x_rows)

    return pooled.reshape(N, C, 1, 1, 1)


if __name__ == "__main__":
    def ref(x):
        return jnp.mean(x.astype(jnp.float32), axis=(2, 3, 4), keepdims=True).astype(x.dtype)

    key = jax.random.PRNGKey(0)

    # 1) Default tiling (N=2, C=4, D=4, H=8, W=8 -> S=256; rows R=8, single S block).
    x1 = jax.random.normal(key, (2, 4, 4, 8, 8), dtype=jnp.float32)
    o1 = jax.block_until_ready(adaptive_global_pooling(x1))
    assert o1.shape == (2, 4, 1, 1, 1), o1.shape
    assert o1.dtype == x1.dtype
    assert jnp.allclose(o1, ref(x1), atol=1e-5, rtol=1e-5)

    # 2) Forced multi-step S reduction (exercises accumulator init / epilogue path).
    o2 = jax.block_until_ready(adaptive_global_pooling(x1, s_tile=128))
    assert jnp.allclose(o2, ref(x1), atol=1e-5, rtol=1e-5)

    # 3) S not divisible by the tile (exercises the last-block-only masked path): S = 384.
    x3 = jax.random.normal(jax.random.PRNGKey(0), (2, 4, 3, 8, 16), dtype=jnp.float32)
    o3 = jax.block_until_ready(adaptive_global_pooling(x3, s_tile=256))
    assert o3.shape == (2, 4, 1, 1, 1), o3.shape
    assert jnp.allclose(o3, ref(x3), atol=1e-5, rtol=1e-5)

    print("KERNEL_OK")
</pallas_src>

<mosaic_0001>
module attributes {stable_mosaic.version = 11 : i64} {
  func.func @_pool_kernel(%arg0: i32, %arg1: i32, %arg2: memref<8x256xf32, #tpu.memory_space<vmem>>, %arg3: memref<8x1xf32, #tpu.memory_space<vmem>>, %arg4: memref<8x1xf32, #tpu.memory_space<vmem>>) attributes {dimension_semantics = [#tpu.dimension_semantics<parallel>, #tpu.dimension_semantics<arbitrary>], iteration_bounds = array<i64: 1, 1>, scalar_prefetch = 0 : i64, scratch_operands = 1 : i64, tpu.core_type = #tpu.core_type<tc>, window_params = [{transform_indices = @transform_0, window_bounds = array<i64: 8, 256>}, {transform_indices = @transform_1, window_bounds = array<i64: 8, 1>}]} {
    %c0_i32 = arith.constant 0 : i32
    %0 = arith.cmpi eq, %arg1, %c0_i32 : i32
    %1 = arith.extui %0 : i1 to i32
    %c0_i32_0 = arith.constant 0 : i32
    %2 = arith.cmpi ne, %1, %c0_i32_0 : i32
    scf.if %2 {
      %cst_8 = arith.constant 0.000000e+00 : f32
      %12 = vector.broadcast %cst_8 : f32 to vector<8x1xf32>
      %c0_9 = arith.constant 0 : index
      %c0_10 = arith.constant 0 : index
      %13 = vector.load %arg4[%c0_9, %c0_10] : memref<8x1xf32, #tpu.memory_space<vmem>>, vector<8x1xf32>
      tpu.vector_store %arg4[%c0_9, %c0_10], %12 {strides = array<i32>} : memref<8x1xf32, #tpu.memory_space<vmem>>, vector<8x1xf32>,
    } else {
    }
    %c0 = arith.constant 0 : index
    %c0_1 = arith.constant 0 : index
    %3 = vector.load %arg2[%c0, %c0_1] : memref<8x256xf32, #tpu.memory_space<vmem>>, vector<8x256xf32>
    %c0_2 = arith.constant 0 : index
    %c0_3 = arith.constant 0 : index
    %4 = vector.load %arg4[%c0_2, %c0_3] : memref<8x1xf32, #tpu.memory_space<vmem>>, vector<8x1xf32>
    %cst = arith.constant dense<0.000000e+00> : vector<8xf32>
    %5 = vector.multi_reduction <add>, %3, %cst [1] : vector<8x256xf32> to vector<8xf32>
    %6 = vector.shape_cast %5 : vector<8xf32> to vector<8x1xf32>
    %7 = arith.addf %4, %6 : vector<8x1xf32>
    %c0_4 = arith.constant 0 : index
    %c0_5 = arith.constant 0 : index
    %8 = vector.load %arg4[%c0_4, %c0_5] : memref<8x1xf32, #tpu.memory_space<vmem>>, vector<8x1xf32>
    tpu.vector_store %arg4[%c0_4, %c0_5], %7 {strides = array<i32>} : memref<8x1xf32, #tpu.memory_space<vmem>>, vector<8x1xf32>,
    %c0_i32_6 = arith.constant 0 : i32
    %9 = arith.cmpi eq, %arg1, %c0_i32_6 : i32
    %10 = arith.extui %9 : i1 to i32
    %c0_i32_7 = arith.constant 0 : i32
    %11 = arith.cmpi ne, %10, %c0_i32_7 : i32
    scf.if %11 {
      %c0_8 = arith.constant 0 : index
      %c0_9 = arith.constant 0 : index
      %12 = vector.load %arg4[%c0_8, %c0_9] : memref<8x1xf32, #tpu.memory_space<vmem>>, vector<8x1xf32>
      %cst_10 = arith.constant 3.906250e-03 : f32
      %13 = vector.broadcast %cst_10 : f32 to vector<8x1xf32>
      %14 = arith.mulf %12, %13 : vector<8x1xf32>
      %c0_11 = arith.constant 0 : index
      %c0_12 = arith.constant 0 : index
      %15 = vector.load %arg3[%c0_11, %c0_12] : memref<8x1xf32, #tpu.memory_space<vmem>>, vector<8x1xf32>
      tpu.vector_store %arg3[%c0_11, %c0_12], %14 {strides = array<i32>} : memref<8x1xf32, #tpu.memory_space<vmem>>, vector<8x1xf32>,
    } else {
    }
    return
  }
  func.func @transform_0(%arg0: i32, %arg1: i32) -> (i32, i32) {
    %c0_i32 = arith.constant 0 : i32
    return %arg0, %arg1 : i32, i32
  }
  func.func @transform_1(%arg0: i32, %arg1: i32) -> (i32, i32) {
    %c0_i32 = arith.constant 0 : i32
    %c0_i32_0 = arith.constant 0 : i32
    return %arg0, %c0_i32 : i32, i32
  }
}

</mosaic_0001>

<llo_original>
// kernel: tpu_custom_call.1
$region0: #{tpu_custom_call.1}
  #allocation0 [shape = 'u32[]', space=smem, size = 0x4, offset = 0x4, fixed_abs, tag = 'smem constant byte address 0x4 - core index']
  #allocation1 [shape = 'u32[144,128]{1,0:T(1,128)}', space=vmem, size = 0x12000, scoped, tag = 'internal scratch']
  #allocation2 [shape = 'f32[8,1]{1,0:T(8,128)}', space=vmem, size = 0x1000, scoped, tag = 'scratch operand']
  %s0 = inlined_call_operand.hbm [shape: f32[8,256], index: 0, kind: input, shape index: {}]
  %s1 = inlined_call_operand.vmem [shape: f32[8,1], index: 1, kind: output, shape index: {}]
  %s2 = sld [smem:[#allocation0]]
  $region26: #{tpu_custom_call.1} parent=0
    _
  %s4 = ssub.s32 1, %s2
  %s5 = scalar_select 0, %s4, %s2
  $region1: #{tpu_custom_call.1} parent=0
    #allocation3 [shape = 'u8[8192]{0}', space=vmem, size = 0x2000, scoped, tag = 'input window, operand 0, single buffered']
    #allocation4 [shape = 's32[1]{0}', space=sflag, size = 0x4, scoped, tag = 'scoped memory for tpu_custom_call.1']
    %6 = vsyncpa [#allocation4], 0
    // Predicated region
    $region2: #{tpu_custom_call.1} parent=1 // pred_check
      _
    $region3: #{tpu_custom_call.1} parent=1 // pred_check_branch
      %8 = sbr.rel (0) target = $region5
    $region4: #{tpu_custom_call.1} parent=1 // pred_region
      %s10 = ssub.s32 256, 256
      %11 = vsyncadd [#allocation4], %s10
      %s13 = sshll.u32 [#allocation3], 4
      %s14 = int_to_ptr.vmem [resolvable:$true] %s13
      %16 = dma.hbm_to_vmem [thread:$0]  %s0, 256, %s14, [#allocation4]
    $region5: #{tpu_custom_call.1} parent=1 // pred_fallthru
      _
    // Predicated region
    $region6: #{tpu_custom_call.1} parent=1 // pred_check
      _
    $region7: #{tpu_custom_call.1} parent=1 // pred_check_branch
      %18 = sbr.rel (0) target = $region9
    $region8: #{tpu_custom_call.1} parent=1 // pred_region
      %19 = dma.done [#allocation4], 256
    $region9: #{tpu_custom_call.1} parent=1 // pred_fallthru
      _
    %p20 = scmp.eq.s32.totalorder 0, 0
    // Predicated region
    $region10: #{tpu_custom_call.1} parent=1 // pred_check
      %p21 = pneg %p20
    $region11: #{tpu_custom_call.1} parent=1 // pred_check_branch
      %23 = sbr.rel (%p21) target = $region13
    $region12: #{tpu_custom_call.1} parent=1 // pred_region
      %vm24 = vcmask 7168
      %25 = vst.msk [vmem:[#allocation2] sm:$0xff] %vm24, 0.0
    $region13: #{tpu_custom_call.1} parent=1 // pred_fallthru
      _
    %v26 = vld [vmem:[#allocation3] sm:$0xff]
    %v27 = vld [vmem:[#allocation3 + $0x8] sm:$0xff]
    %v28 = vld [vmem:[#allocation2] sm:$0xff]
    %v29 = vadd.f32 %v26, %v27
    %30 = vadd.xlane.f32.xlu0 %v29
    %v31 = vpop.xlane.xlu0 %30
    %v32 = vadd.f32 %v28, %v31
    %vm33 = vcmask 7168
    %34 = vst.msk [vmem:[#allocation2] sm:$0xff] %vm33, %v32
    // Predicated region
    $region14: #{tpu_custom_call.1} parent=1 // pred_check
      %p35 = pneg %p20
    $region15: #{tpu_custom_call.1} parent=1 // pred_check_branch
      %37 = sbr.rel (%p35) target = $region17
    $region16: #{tpu_custom_call.1} parent=1 // pred_region
      %v38 = vld [vmem:[#allocation2] sm:$0xff]
      %v39 = vmul.f32 %v38, 0.00390625
      %40 = vst.msk [vmem:[%s1] sm:$0xff] %vm33, %v39
    $region17: #{tpu_custom_call.1} parent=1 // pred_fallthru
      _
    // Predicated region
    $region18: #{tpu_custom_call.1} parent=1 // pred_check
      _
    $region19: #{tpu_custom_call.1} parent=1 // pred_check_branch
      %42 = sbr.rel (0) target = $region21
    $region20: #{tpu_custom_call.1} parent=1 // pred_region
      _
    $region21: #{tpu_custom_call.1} parent=1 // pred_fallthru
      _
    // Predicated region
    $region22: #{tpu_custom_call.1} parent=1 // pred_check
      _
    $region23: #{tpu_custom_call.1} parent=1 // pred_check_branch
      %44 = sbr.rel (0) target = $region25
    $region24: #{tpu_custom_call.1} parent=1 // pred_region
      _
    $region25: #{tpu_custom_call.1} parent=1 // pred_fallthru
      _
    %45 = vsyncpa [#allocation4], 1

</llo_original>
